<compile_context>
chip_gen: v7x
topology: tpu7x:2x2x1
jax: 0.10.0
libtpu: 0.0.40
codegen_flags: <defaults>
</compile_context>

<pallas_src>
import functools

import jax
import jax.numpy as jnp
from jax.experimental import pallas as pl
from jax.experimental.pallas import tpu as pltpu


def _round_up(n, m):
    return ((n + m - 1) // m) * m


def classifier_kernel(x_ref, w_ref, b_ref, out_ref):
    # Single fused matmul: (TB, F) @ (F, TN) -> (TB, TN), f32 accumulation on MXU.
    x = x_ref[...].astype(jnp.bfloat16)          # no-op if x is already bf16
    acc = jnp.dot(x, w_ref[...], preferred_element_type=jnp.float32)
    out_ref[...] = (acc + b_ref[...]).astype(out_ref.dtype)


@functools.partial(jax.jit, static_argnames=("tile_b", "tile_n", "out_dtype"))
def classifier_forward(x, params, *, tile_b=256, tile_n=1024, out_dtype=jnp.float32):
    """x: (B, F) float32 or bfloat16.  params: dict as produced by `init_params`."""
    B, F = x.shape
    C = params["w2"].shape[1]

    # ---- parameter prep (plain JAX glue; fold BN + both linears into one) ----
    eps = 1e-5
    scale = params["bn_gamma"] * jax.lax.rsqrt(params["bn_var"] + eps)        # (H,)
    shift = params["bn_beta"] - params["bn_mean"] * scale                     # (H,)
    w1f = params["w1"] * scale[None, :]                                       # (F, H)
    b1f = params["b1"] * scale + shift                                        # (H,)
    # Collapse: out = x @ (W1f @ W2) + (b1f @ W2 + b2).  Valid: no ReLU between them.
    w_eff = jnp.dot(w1f, params["w2"], preferred_element_type=jnp.float32)    # (F, C)
    b_eff = jnp.dot(b1f, params["w2"], preferred_element_type=jnp.float32) + params["b2"]

    # ---- class-dim tiling: lane-dense (multiple of 128), bounded per-step VMEM ----
    Cp = _round_up(C, 128)
    nc = pl.cdiv(Cp, tile_n)
    TN = _round_up(pl.cdiv(Cp, nc), 128)
    Cpp = nc * TN
    if Cpp != C:
        w_eff = jnp.pad(w_eff, ((0, 0), (0, Cpp - C)))
        b_eff = jnp.pad(b_eff, ((0, Cpp - C),))
    w_eff = w_eff.astype(jnp.bfloat16)                                        # (F, Cpp)
    b_eff = b_eff.reshape(1, Cpp).astype(jnp.float32)

    # ---- batch tiling: >= 2 steps when B > 8 (v7x megacore), minimal pad waste ----
    B8 = _round_up(B, 8)
    nb = pl.cdiv(B8, tile_b)
    if nb == 1 and B8 > 8:
        nb = 2
    TB = _round_up(pl.cdiv(B, nb), 8)
    Bp = nb * TB
    xp = jnp.pad(x, ((0, Bp - B), (0, 0))) if Bp != B else x

    grid = (nb, nc)

    x_itemsize = jnp.dtype(xp.dtype).itemsize
    out_itemsize = jnp.dtype(out_dtype).itemsize
    per_step = TB * F * x_itemsize + F * TN * 2 + TN * 4 + TB * TN * out_itemsize
    # Double-buffered tiles + headroom; clamp to v7x physical VMEM.
    vmem_limit = int(min(max(3 * per_step + (2 << 20), 8 << 20), 64 << 20))

    cost = pl.CostEstimate(
        flops=2 * Bp * F * Cpp,
        transcendentals=0,
        bytes_accessed=(xp.size * x_itemsize + w_eff.size * 2 + b_eff.size * 4
                        + Bp * Cpp * out_itemsize),
    )

    out = pl.pallas_call(
        classifier_kernel,
        out_shape=jax.ShapeDtypeStruct((Bp, Cpp), out_dtype),
        grid=grid,
        in_specs=[
            pl.BlockSpec((TB, F), lambda i, j: (i, 0)),   # x: per batch tile, reused over j
            pl.BlockSpec((F, TN), lambda i, j: (0, j)),   # fused weight: streams over class tiles
            pl.BlockSpec((1, TN), lambda i, j: (0, j)),   # fused bias
        ],
        out_specs=pl.BlockSpec((TB, TN), lambda i, j: (i, j)),
        compiler_params=pltpu.CompilerParams(
            dimension_semantics=("parallel", "parallel"),
            vmem_limit_bytes=vmem_limit,
        ),
        cost_estimate=cost,
    )(xp, w_eff, b_eff)

    return out[:B, :C]


def init_params(key, feat_dim, num_classes, num_bottleneck=512):
    """Deterministic init mirroring weights_init_kaiming / weights_init_classifier."""
    k1, k2, k3 = jax.random.split(key, 3)

    # nn.Linear(feat_dim, num_bottleneck), kaiming_normal_ mode='fan_out', a=0:
    #   std = sqrt(2 / fan_out) = sqrt(2 / num_bottleneck); bias = 0.
    std1 = (2.0 / num_bottleneck) ** 0.5
    w1_pt = jax.random.normal(k1, (num_bottleneck, feat_dim), jnp.float32) * std1
    b1 = jnp.zeros((num_bottleneck,), jnp.float32)

    # BatchNorm1d(num_bottleneck): gamma ~ N(1, 0.02), beta = 0,
    # running_mean = 0, running_var = 1 (fresh module, eval mode).
    bn_gamma = 1.0 + 0.02 * jax.random.normal(k2, (num_bottleneck,), jnp.float32)
    bn_beta = jnp.zeros((num_bottleneck,), jnp.float32)
    bn_mean = jnp.zeros((num_bottleneck,), jnp.float32)
    bn_var = jnp.ones((num_bottleneck,), jnp.float32)

    # nn.Linear(num_bottleneck, num_classes): weight ~ N(0, 0.001), bias = 0.
    w2_pt = 0.001 * jax.random.normal(k3, (num_classes, num_bottleneck), jnp.float32)
    b2 = jnp.zeros((num_classes,), jnp.float32)

    # Pre-transpose PyTorch (out, in) weights to (in, out) for the kernel layout.
    return {
        "w1": w1_pt.T,          # (F, H)
        "b1": b1,               # (H,)
        "bn_gamma": bn_gamma,
        "bn_beta": bn_beta,
        "bn_mean": bn_mean,
        "bn_var": bn_var,
        "w2": w2_pt.T,          # (H, C)
        "b2": b2,               # (C,)
    }


def reference_forward(x, params):
    """Pure-JAX f32 reference of the eval-mode PyTorch module (two-stage)."""
    eps = 1e-5
    h = x @ params["w1"] + params["b1"]
    h = (h - params["bn_mean"]) / jnp.sqrt(params["bn_var"] + eps)
    h = h * params["bn_gamma"] + params["bn_beta"]
    return h @ params["w2"] + params["b2"]


if __name__ == "__main__":
    key = jax.random.PRNGKey(0)
    kx, kp = jax.random.split(key)

    # Small shapes; B deliberately not a multiple of 8 and C not a multiple of 128
    # to exercise the padding paths.  Bottleneck stays at 512 as in the module.
    B, FEAT, NUM_CLASSES = 10, 32, 16
    x = jax.random.normal(kx, (B, FEAT), jnp.float32)
    params = init_params(kp, FEAT, NUM_CLASSES, num_bottleneck=512)

    out = classifier_forward(x, params)
    out = jax.block_until_ready(out)

    ref = reference_forward(x, params)
    assert out.shape == (B, NUM_CLASSES)
    # bf16 MXU inputs (fused weight + activation cast) -> relaxed tolerance vs f32 ref.
    assert jnp.allclose(out, ref, atol=5e-3, rtol=5e-2), (
        float(jnp.max(jnp.abs(out - ref))))

    print("KERNEL_OK")
</pallas_src>

<mosaic_0001>
module attributes {stable_mosaic.version = 11 : i64} {
  func.func @classifier_kernel(%arg0: i32, %arg1: i32, %arg2: memref<8x32xf32, #tpu.memory_space<vmem>>, %arg3: memref<32x128xbf16, #tpu.memory_space<vmem>>, %arg4: memref<1x128xf32, #tpu.memory_space<vmem>>, %arg5: memref<8x128xf32, #tpu.memory_space<vmem>>) attributes {dimension_semantics = [#tpu.dimension_semantics<parallel>, #tpu.dimension_semantics<parallel>], iteration_bounds = array<i64: 2, 1>, scalar_prefetch = 0 : i64, scratch_operands = 0 : i64, tpu.core_type = #tpu.core_type<tc>, window_params = [{transform_indices = @transform_0, window_bounds = array<i64: 8, 32>}, {transform_indices = @transform_1, window_bounds = array<i64: 32, 128>}, {transform_indices = @transform_2, window_bounds = array<i64: 1, 128>}, {transform_indices = @transform_3, window_bounds = array<i64: 8, 128>}]} {
    %c0 = arith.constant 0 : index
    %c0_0 = arith.constant 0 : index
    %0 = vector.load %arg2[%c0, %c0_0] : memref<8x32xf32, #tpu.memory_space<vmem>>, vector<8x32xf32>
    %1 = arith.truncf %0 : vector<8x32xf32> to vector<8x32xbf16>
    %c0_1 = arith.constant 0 : index
    %c0_2 = arith.constant 0 : index
    %2 = vector.load %arg3[%c0_1, %c0_2] : memref<32x128xbf16, #tpu.memory_space<vmem>>, vector<32x128xbf16>
    %cst = arith.constant dense<0.000000e+00> : vector<8x128xf32>
    %3 = tpu.matmul %1, %2, %cst {dimension_numbers = #tpu.dot_dimension_numbers<[1], [0], [0], [1], [0, 0, 1, 1], [], []>} : vector<8x32xbf16>, vector<32x128xbf16>, vector<8x128xf32> -> vector<8x128xf32>
    %c0_3 = arith.constant 0 : index
    %c0_4 = arith.constant 0 : index
    %4 = vector.load %arg4[%c0_3, %c0_4] : memref<1x128xf32, #tpu.memory_space<vmem>>, vector<1x128xf32>
    %5 = vector.broadcast %4 : vector<1x128xf32> to vector<8x128xf32>
    %6 = arith.addf %3, %5 : vector<8x128xf32>
    %c0_5 = arith.constant 0 : index
    %c0_6 = arith.constant 0 : index
    %7 = vector.load %arg5[%c0_5, %c0_6] : memref<8x128xf32, #tpu.memory_space<vmem>>, vector<8x128xf32>
    tpu.vector_store %arg5[%c0_5, %c0_6], %6 {strides = array<i32>} : memref<8x128xf32, #tpu.memory_space<vmem>>, vector<8x128xf32>,
    return
  }
  func.func @transform_0(%arg0: i32, %arg1: i32) -> (i32, i32) {
    %c0_i32 = arith.constant 0 : i32
    %c0_i32_0 = arith.constant 0 : i32
    return %arg0, %c0_i32 : i32, i32
  }
  func.func @transform_1(%arg0: i32, %arg1: i32) -> (i32, i32) {
    %c0_i32 = arith.constant 0 : i32
    %c0_i32_0 = arith.constant 0 : i32
    return %c0_i32, %arg1 : i32, i32
  }
  func.func @transform_2(%arg0: i32, %arg1: i32) -> (i32, i32) {
    %c0_i32 = arith.constant 0 : i32
    %c0_i32_0 = arith.constant 0 : i32
    return %c0_i32, %arg1 : i32, i32
  }
  func.func @transform_3(%arg0: i32, %arg1: i32) -> (i32, i32) {
    %c0_i32 = arith.constant 0 : i32
    return %arg0, %arg1 : i32, i32
  }
}

</mosaic_0001>

<llo_original>
// kernel: classifier_forward.1
$region0: #{classifier_forward.1}
  #allocation0 [shape = 'u32[]', space=smem, size = 0x4, offset = 0x4, fixed_abs, tag = 'smem constant byte address 0x4 - core index']
  #allocation1 [shape = 'u32[144,128]{1,0:T(1,128)}', space=vmem, size = 0x12000, scoped, tag = 'internal scratch']
  %s0 = inlined_call_operand.vmem [shape: f32[16,32], index: 0, kind: input, shape index: {}]
  %s1 = inlined_call_operand.vmem [shape: bf16[32,128], index: 1, kind: input, shape index: {}]
  %s2 = inlined_call_operand.vmem [shape: f32[1,128], index: 2, kind: input, shape index: {}]
  %s3 = inlined_call_operand.hbm [shape: f32[16,128], index: 3, kind: output, shape index: {}]
  %s4 = sld [smem:[#allocation0]]
  $region45: #{classifier_forward.1} parent=0
    _
  %s6 = ssub.s32 1, %s4
  %s7 = scalar_select 0, %s6, %s4
  $region1: #{classifier_forward.1} parent=0
    #allocation2 [shape = 'u8[8192]{0}', space=vmem, size = 0x2000, scoped, tag = 'output window, operand 0']
    #allocation3 [shape = 's32[2]{0}', space=sflag, size = 0x8, scoped, tag = 'scoped memory for classifier_forward.1']
    %8 = vsyncpa [#allocation3], 0
    %s9 = scalar_lea.sflag [#allocation3], 1
    %10 = vsyncpa %s9, 0
    loop: start=0, step=1, limit=4
    $region2: #{classifier_forward.1} parent=1 // loop_pre_header
      _
    $region3: #{classifier_forward.1} parent=1 // loop_header
      %s12 = sphi 0, %s16
      %p13 = scmp.ge.s32.totalorder %s12, 4
      %s19 = sphi 0, %s31
      %s20 = sphi 0, %s27
      %s21 = sphi 0, %s19
      %s22 = sphi 0, %s20
      %s23 = sphi 0, %s21
      %s24 = sphi 0, %s22
      %s34 = sphi 0, %s36
      %s37 = sphi 0, %s34
      %s38 = sphi 0, %s37
      %s54 = sphi 0, %s38
      %s60 = sphi 0, %s62
      %s63 = sphi 0, %s60
      %s64 = sphi 0, %s63
      %s80 = sphi 0, %s64
      %s86 = sphi 0, %s88
      %s89 = sphi 0, %s86
      %s90 = sphi 0, %s89
      %s106 = sphi 0, %s90
      %s114 = sphi 0, %s116
      %s117 = sphi 0, %s114
      %s118 = sphi 0, %s117
      %s134 = sphi 0, %s118
    $region4: #{classifier_forward.1} parent=1 // loop_header_branch
      %15 = sbr.rel (%p13) target = $region8
    $region5: #{classifier_forward.1} parent=1 // loop_body
      %s17 = ssub.s32 %s12, 1
      %s18 = ssub.s32 %s12, 2
      %s25 = sadd.s32 1, %s20
      %p26 = scmp.ge.s32.totalorder %s25, 1
      %s27 = scalar_select %p26, 0, %s25
      %s28 = sadd.s32 1, %s19
      %s29 = scalar_select %p26, %s28, %s19
      %p30 = scmp.ge.s32.totalorder %s29, 2
      %s31 = scalar_select %p30, 0, %s29
      %s32 = ssub.s32 %s19, %s31
      %p33 = scmp.eq.s32.totalorder %s32, 0
      %s35 = sadd.s32 %s34, 1
      %s36 = scalar_select %p33, %s34, %s35
      %p39 = pneg %p33
      %p40 = scmp.eq.s32.totalorder %s12, 1
      %p41 = por %p39, %p40
      %p42 = scmp.ne.s32.totalorder %s34, %s37
      %p43 = scmp.eq.s32.totalorder %s12, 0
      %p44 = por %p42, %p43
      %p45 = scmp.ne.s32.totalorder %s34, %s37
      %p46 = scmp.eq.s32.totalorder %s17, 1
      %p47 = por %p45, %p46
      %p48 = scmp.ne.s32.totalorder %s37, %s38
      %p49 = scmp.eq.s32.totalorder %s17, 0
      %p50 = por %p48, %p49
      %p51 = scmp.ne.s32.totalorder %s37, %s38
      %p52 = scmp.eq.s32.totalorder %s18, 1
      %p53 = por %p51, %p52
      %p55 = scmp.ne.s32.totalorder %s38, %s54
      %p56 = scmp.eq.s32.totalorder %s18, 0
      %p57 = por %p55, %p56
      %s58 = ssub.s32 %s20, %s27
      %p59 = scmp.eq.s32.totalorder %s58, 0
      %s61 = sadd.s32 %s60, 1
      %s62 = scalar_select %p59, %s60, %s61
      %p65 = pneg %p59
      %p66 = scmp.eq.s32.totalorder %s12, 1
      %p67 = por %p65, %p66
      %p68 = scmp.ne.s32.totalorder %s60, %s63
      %p69 = scmp.eq.s32.totalorder %s12, 0
      %p70 = por %p68, %p69
      %p71 = scmp.ne.s32.totalorder %s60, %s63
      %p72 = scmp.eq.s32.totalorder %s17, 1
      %p73 = por %p71, %p72
      %p74 = scmp.ne.s32.totalorder %s63, %s64
      %p75 = scmp.eq.s32.totalorder %s17, 0
      %p76 = por %p74, %p75
      %p77 = scmp.ne.s32.totalorder %s63, %s64
      %p78 = scmp.eq.s32.totalorder %s18, 1
      %p79 = por %p77, %p78
      %p81 = scmp.ne.s32.totalorder %s64, %s80
      %p82 = scmp.eq.s32.totalorder %s18, 0
      %p83 = por %p81, %p82
      %s84 = ssub.s32 %s20, %s27
      %p85 = scmp.eq.s32.totalorder %s84, 0
      %s87 = sadd.s32 %s86, 1
      %s88 = scalar_select %p85, %s86, %s87
      %p91 = pneg %p85
      %p92 = scmp.eq.s32.totalorder %s12, 1
      %p93 = por %p91, %p92
      %p94 = scmp.ne.s32.totalorder %s86, %s89
      %p95 = scmp.eq.s32.totalorder %s12, 0
      %p96 = por %p94, %p95
      %p97 = scmp.ne.s32.totalorder %s86, %s89
      %p98 = scmp.eq.s32.totalorder %s17, 1
      %p99 = por %p97, %p98
      %p100 = scmp.ne.s32.totalorder %s89, %s90
      %p101 = scmp.eq.s32.totalorder %s17, 0
      %p102 = por %p100, %p101
      %p103 = scmp.ne.s32.totalorder %s89, %s90
      %p104 = scmp.eq.s32.totalorder %s18, 1
      %p105 = por %p103, %p104
      %p107 = scmp.ne.s32.totalorder %s90, %s106
      %p108 = scmp.eq.s32.totalorder %s18, 0
      %p109 = por %p107, %p108
      %s110 = ssub.s32 %s19, %s31
      %s111 = ssub.s32 %s20, %s27
      %s112 = sor.u32 %s110, %s111
      %p113 = scmp.eq.s32.totalorder %s112, 0
      %s115 = sadd.s32 %s114, 1
      %s116 = scalar_select %p113, %s114, %s115
      %p119 = pneg %p113
      %p120 = scmp.eq.s32.totalorder %s12, 1
      %p121 = por %p119, %p120
      %p122 = scmp.ne.s32.totalorder %s114, %s117
      %p123 = scmp.eq.s32.totalorder %s12, 0
      %p124 = por %p122, %p123
      %p125 = scmp.ne.s32.totalorder %s114, %s117
      %p126 = scmp.eq.s32.totalorder %s17, 1
      %p127 = por %p125, %p126
      %p128 = scmp.ne.s32.totalorder %s117, %s118
      %p129 = scmp.eq.s32.totalorder %s17, 0
      %p130 = por %p128, %p129
      %p131 = scmp.ne.s32.totalorder %s117, %s118
      %p132 = scmp.eq.s32.totalorder %s18, 1
      %p133 = por %p131, %p132
      %p135 = scmp.ne.s32.totalorder %s118, %s134
      %p136 = scmp.eq.s32.totalorder %s18, 0
      %p137 = por %p135, %p136
      %p138 = scmp.le.s32.totalorder 1, %s12
      %p139 = scmp.lt.s32.totalorder %s12, 3
      %p140 = pnand %p138, %p139
      %p141 = pneg %p140
      // Predicated region
      $region9: #{classifier_forward.1} parent=5 // pred_check
        _
      $region10: #{classifier_forward.1} parent=5 // pred_check_branch
        %143 = sbr.rel (%p140) target = $region12
      $region11: #{classifier_forward.1} parent=5 // pred_region
        %s144 = ssub.s32 %s12, 1
        // Predicated region
        $region13: #{classifier_forward.1} parent=11 // pred_check
          %p145 = pneg %p76
        $region14: #{classifier_forward.1} parent=11 // pred_check_branch
          %147 = sbr.rel (%p145) target = $region16
        $region15: #{classifier_forward.1} parent=11 // pred_region
          %p148 = scmp.lt.s32.totalorder %s22, 0
          %s149 = scalar_select %p148, %s22, 0
          %s150 = smul.addr %s149, 4
          %s151 = scalar_lea.vmem %s1, %s150
        $region16: #{classifier_forward.1} parent=11 // pred_fallthru
          _
        // Predicated region
        $region17: #{classifier_forward.1} parent=11 // pred_check
          %p152 = pneg %p102
        $region18: #{classifier_forward.1} parent=11 // pred_check_branch
          %154 = sbr.rel (%p152) target = $region20
        $region19: #{classifier_forward.1} parent=11 // pred_region
          %p155 = scmp.lt.s32.totalorder %s22, 0
          %s156 = scalar_select %p155, %s22, 0
          %s157 = scalar_lea.vmem %s2, %s156
        $region20: #{classifier_forward.1} parent=11 // pred_fallthru
          _
      $region12: #{classifier_forward.1} parent=5 // pred_fallthru
        _
      %p158 = scmp.lt.s32.totalorder %s12, 2
      // Predicated region
      $region21: #{classifier_forward.1} parent=5 // pred_check
        %p159 = pneg %p158
      $region22: #{classifier_forward.1} parent=5 // pred_check_branch
        %161 = sbr.rel (%p159) target = $region24
      $region23: #{classifier_forward.1} parent=5 // pred_region
        // Predicated region
        $region25: #{classifier_forward.1} parent=23 // pred_check
          %p162 = pneg %p44
        $region26: #{classifier_forward.1} parent=23 // pred_check_branch
          %164 = sbr.rel (%p162) target = $region28
        $region27: #{classifier_forward.1} parent=23 // pred_region
          %p165 = scmp.lt.s32.totalorder %s19, 1
          %s166 = scalar_select %p165, %s19, 1
          %s167 = smul.addr %s166, 8
          %s168 = scalar_lea.vmem %s0, %s167
        $region28: #{classifier_forward.1} parent=23 // pred_fallthru
          _
      $region24: #{classifier_forward.1} parent=5 // pred_fallthru
        _
      %p169 = scmp.le.s32.totalorder 1, %s12
      %p170 = scmp.lt.s32.totalorder %s12, 3
      %p171 = pnand %p169, %p170
      %p172 = pneg %p171
      // Predicated region
      $region29: #{classifier_forward.1} parent=5 // pred_check
        _
      $region30: #{classifier_forward.1} parent=5 // pred_check_branch
        %174 = sbr.rel (%p171) target = $region32
      $region31: #{classifier_forward.1} parent=5 // pred_region
        %s175 = ssub.s32 %s12, 1
        %p176 = scmp.lt.s32.totalorder %s21, 1
        %s177 = scalar_select %p176, %s21, 1
        %s178 = smul.addr %s177, 8
        %s179 = scalar_lea.vmem %s0, %s178
        %p180 = pneg %p50
        %p181 = pneg %p47
        %p182 = scmp.lt.s32.totalorder %s22, 0
        %s183 = scalar_select %p182, %s22, 0
        %s184 = smul.addr %s183, 4
        %s185 = scalar_lea.vmem %s1, %s184
        %p186 = pneg %p76
        %p187 = pneg %p73
        %p188 = scmp.lt.s32.totalorder %s22, 0
        %s189 = scalar_select %p188, %s22, 0
        %s190 = scalar_lea.vmem %s2, %s189
        %p191 = pneg %p102
        %p192 = pneg %p99
        %p193 = pneg %p130
        %p194 = pneg %p127
        %s195 = sand.u32 %s117, 1
        %s196 = scalar_lea.sflag [#allocation3], %s195
        %s197 = sand.u32 %s117, 1
        %s198 = smul.addr %s197, 8
        %s199 = scalar_lea.vmem [#allocation2], %s198
        %p200 = scmp.lt.s32.totalorder %s21, 1
        %s201 = scalar_select %p200, %s21, 1
        %s202 = smul.addr %s201, 8
        %s203 = scalar_lea.vmem %s0, %s202
        %p204 = scmp.lt.s32.totalorder %s22, 0
        %s205 = scalar_select %p204, %s22, 0
        %s206 = smul.addr %s205, 4
        %s207 = scalar_lea.vmem %s1, %s206
        %p208 = scmp.lt.s32.totalorder %s22, 0
        %s209 = scalar_select %p208, %s22, 0
        %s210 = scalar_lea.vmem %s2, %s209
        %v212 = vld [vmem:[%s203] sm:$0xff]
        %v213 = vpack.c.bf16 %v212, %v212
        %v214 = vld [vmem:[%s207] sm:$0xf]
        %v215 = vld [vmem:[%s207 + $0x4] sm:$0xf]
        %v216 = vld [vmem:[%s207 + $0x8] sm:$0xf]
        %v217 = vld [vmem:[%s207 + $0xc] sm:$0xf]
        %v218 = vld [vmem:[%s210] sm:$0x1]
        %v220 = vlaneseq
        %v221 = vshrl.u32 %v220, 7
        %v222 = vsub.s32 0, %v221
        %v223 = vrot.slane %v218, %v222
        %v229 = vunpack.c.l.b16 %v214
        %v230 = vunpack.c.l.b16 %v215
        %v231 = vunpack.c.l.b16 %v216
        %v232 = vunpack.c.l.b16 %v217
        %v233 = vpack.c.b16 %v230, %v229
        %v234 = vpack.c.b16 %v232, %v231
        %vm237 = vcmask 261120
        %v239 = vsel %vm237, %v213, 0
        %241 = vmatprep.subr.bf16.mxu0 0
        %242 = vmatpush1.bf16.msra.mxu0 %v233
        %243 = vmatprep.subr.bf16.mxu0 0
        %244 = vmatpush1.bf16.msra.mxu0 %v234
        %245 = vmatprep.subr.bf16.mxu0 0
        %246 = vmatpush1.bf16.msra.mxu0 0
        %247 = vmatprep.subr.bf16.mxu0 0
        %248 = vmatpush1.bf16.msra.mxu0 0
        %249 = vmatprep.subr.bf16.mxu0 0
        %250 = vmatpush1.bf16.msra.mxu0 0
        %251 = vmatprep.subr.bf16.mxu0 0
        %252 = vmatpush1.bf16.msra.mxu0 0
        %253 = vmatprep.subr.bf16.mxu0 0
        %254 = vmatpush1.bf16.msra.mxu0 0
        %255 = vmatprep.subr.bf16.mxu0 0
        %256 = vmatpush1.bf16.msra.mxu0 0
        %257 = vmatprep.subr.bf16.mxu0 0
        %258 = vmatpush1.bf16.msra.mxu0 0
        %259 = vmatprep.subr.bf16.mxu0 0
        %260 = vmatpush1.bf16.msra.mxu0 0
        %261 = vmatprep.subr.bf16.mxu0 0
        %262 = vmatpush1.bf16.msra.mxu0 0
        %263 = vmatprep.subr.bf16.mxu0 0
        %264 = vmatpush1.bf16.msra.mxu0 0
        %265 = vmatprep.subr.bf16.mxu0 0
        %266 = vmatpush1.bf16.msra.mxu0 0
        %267 = vmatprep.subr.bf16.mxu0 0
        %268 = vmatpush1.bf16.msra.mxu0 0
        %269 = vmatprep.subr.bf16.mxu0 0
        %270 = vmatpush1.bf16.msra.mxu0 0
        %271 = vmatprep.subr.bf16.mxu0 0
        %272 = vmatpush1.bf16.msra.mxu0 0
        %273 = vmatprep.mubr.bf16.mxu0 0
        %274 = vmatmul.mubr.bf16.gmra.mrb[0].mxu0 %v239
        %v275 = vpop.f32.mrb[0].mxu0
        %v276 = vadd.f32 %v223, %v275
        %v277 = vpop.f32.mrb[0].mxu0
        %v278 = vpop.f32.mrb[0].mxu0
        %v279 = vpop.f32.mrb[0].mxu0
        %280 = vdwg.mxu0
        %281 = vst [vmem:[%s199] sm:$0xff] %v276
        %s282 = sand.u32 %s117, 1
        %s283 = scalar_lea.sflag [#allocation3], %s282
        %s284 = sand.u32 %s117, 1
        %s285 = smul.addr %s284, 8
        %s286 = scalar_lea.vmem [#allocation2], %s285
        // Predicated region
        $region33: #{classifier_forward.1} parent=31 // pred_check
          %p287 = pneg %p127
        $region34: #{classifier_forward.1} parent=31 // pred_check_branch
          %289 = sbr.rel (%p287) target = $region36
        $region35: #{classifier_forward.1} parent=31 // pred_region
          %s291 = ssub.s32 128, 128
          %292 = vsyncadd %s283, %s291
          %s293 = sadd.s32 %s22, %s21
          %s294 = smul.addr %s293, 128
          %s295 = scalar_lea.hbm %s3, %s294
          %s297 = sshll.u32 %s286, 4
          %s298 = int_to_ptr.vmem [resolvable:$true] %s297
          %300 = dma.vmem_to_hbm [thread:$0]  %s298, 128, %s295, %s283
        $region36: #{classifier_forward.1} parent=31 // pred_fallthru
          _
      $region32: #{classifier_forward.1} parent=5 // pred_fallthru
        _
      %p301 = scmp.le.s32.totalorder 2, %s12
      // Predicated region
      $region37: #{classifier_forward.1} parent=5 // pred_check
        %p302 = pneg %p301
      $region38: #{classifier_forward.1} parent=5 // pred_check_branch
        %304 = sbr.rel (%p302) target = $region40
      $region39: #{classifier_forward.1} parent=5 // pred_region
        %s305 = ssub.s32 %s12, 2
        // Predicated region
        $region41: #{classifier_forward.1} parent=39 // pred_check
          %p306 = pneg %p133
        $region42: #{classifier_forward.1} parent=39 // pred_check_branch
          %308 = sbr.rel (%p306) target = $region44
        $region43: #{classifier_forward.1} parent=39 // pred_region
          %s309 = sand.u32 %s118, 1
          %s310 = scalar_lea.sflag [#allocation3], %s309
          %s311 = sand.u32 %s118, 1
          %s312 = smul.addr %s311, 8
          %s313 = scalar_lea.vmem [#allocation2], %s312
          %314 = dma.done %s310, 128
        $region44: #{classifier_forward.1} parent=39 // pred_fallthru
          _
      $region40: #{classifier_forward.1} parent=5 // pred_fallthru
        _
    $region6: #{classifier_forward.1} parent=1 // loop_footer
      %s16 = sadd.s32 1, %s12
    $region7: #{classifier_forward.1} parent=1 // loop_footer_branch
      %11 = sbr.rel target = $region3
    $region8: #{classifier_forward.1} parent=1 // loop_exit
      _
    %315 = vsyncpa [#allocation3], 1
    %s316 = scalar_lea.sflag [#allocation3], 1
    %317 = vsyncpa %s316, 1

</llo_original>
